<compile_context>
chip_gen: v5e
topology: v5e:2x2
jax: 0.10.0
libtpu: 0.0.40
codegen_flags: <defaults>
</compile_context>

<pallas_src>
import functools

import jax
import jax.numpy as jnp
from jax import lax
from jax.experimental import pallas as pl
from jax.experimental.pallas import tpu as pltpu

HID = 8
NUM_LAYERS = 4


# ---------------------------------------------------------------------------
# Kernels
# ---------------------------------------------------------------------------
def gru_kernel(x_ref, wih_ref, whh_ref, bgi_ref, bhn_ref, out_ref, gi_sc, *, bp):
    """4-layer GRU recurrence, whole (padded) sequence resident in VMEM.

    x_ref   : (T*bp, 8)   time-major rows (row = t*bp + b); feat 0 = input, 1..7 zero
    wih_ref : (4, 8, 24)  transposed weight_ih per layer (layer-0 rows 1..7 zero)
    whh_ref : (4, 8, 24)  transposed weight_hh per layer
    bgi_ref : (4, 1, 24)  b_ih with b_hh's r/z columns folded in
    bhn_ref : (4, 1, 8)   b_hh n-gate columns (must stay inside r * (.))
    out_ref : (T*bp, 8)   final-layer sequence; reused as the inter-layer buffer
    gi_sc   : (T*bp, 24)  hoisted input-gate pre-activations for the current layer
    """
    T = x_ref.shape[0] // bp

    for layer in range(NUM_LAYERS):               # 4 layers, Python-unrolled
        src = x_ref if layer == 0 else out_ref
        wih = wih_ref[layer]                      # (8, 24)
        whh = whh_ref[layer]                      # (8, 24)
        bhn = bhn_ref[layer]                      # (1, 8)

        # Hoisted input-gate matmul: one (T*bp, 8) @ (8, 24) per layer instead of
        # T tiny latency-bound matmuls on the serial chain.  Biases pre-folded.
        gi_sc[...] = (
            jnp.dot(src[...], wih, preferred_element_type=jnp.float32)
            + bgi_ref[layer]
        )

        def step(t, h):
            row = pl.multiple_of(t * bp, bp)                            # 8-aligned
            gi = gi_sc[pl.ds(row, bp), :]                               # (bp, 24)
            gh = jnp.dot(h, whh, preferred_element_type=jnp.float32)    # (bp, 24)
            r = jax.nn.sigmoid(gi[:, :HID] + gh[:, :HID])
            z = jax.nn.sigmoid(gi[:, HID:2 * HID] + gh[:, HID:2 * HID])
            n = jnp.tanh(gi[:, 2 * HID:] + r * (gh[:, 2 * HID:] + bhn))
            h_new = (1.0 - z) * n + z * h
            out_ref[pl.ds(row, bp), :] = h_new    # becomes the next layer's input
            return h_new                          # hidden state stays in vregs

        lax.fori_loop(0, T, step, jnp.zeros((bp, HID), jnp.float32))


def mlp_kernel(x_ref, w1_ref, b1_ref, w2_ref, b2_ref, w3_ref, b3_ref, o_ref):
    """Linear+ReLU -> Linear+ReLU -> Linear, fused in one call."""
    h1 = jnp.maximum(
        jnp.dot(x_ref[...], w1_ref[...], preferred_element_type=jnp.float32)
        + b1_ref[...], 0.0)
    h2 = jnp.maximum(
        jnp.dot(h1, w2_ref[...], preferred_element_type=jnp.float32)
        + b2_ref[...], 0.0)
    o_ref[...] = jnp.dot(h2, w3_ref[...], preferred_element_type=jnp.float32) + b3_ref[...]


# ---------------------------------------------------------------------------
# Wrapper
# ---------------------------------------------------------------------------
def _round_up(n, m):
    return ((n + m - 1) // m) * m


def gru_classifier_forward(x, params, max_seq_len):
    T = max_seq_len
    x = x.astype(jnp.float32)

    # torch: x.unsqueeze(2).view(T, -1, 1) -- row-major reinterpretation (NOT a transpose)
    x_seq = jnp.reshape(x[..., None], (T, -1, 1))
    Bp = x_seq.shape[1]
    Bp_pad = max(8, _round_up(Bp, 8))             # f32 sublane multiple

    # Pad feature 1 -> 8 and pseudo-batch Bp -> Bp_pad, then lay out as (T*Bp_pad, 8)
    # with row index t*Bp_pad + b.  Padded batch rows are independent garbage and
    # are sliced away after the kernel.
    x_pad = jnp.zeros((T, Bp_pad, HID), jnp.float32).at[:, :Bp, 0:1].set(x_seq)
    x_pad = jnp.reshape(x_pad, (T * Bp_pad, HID))

    # Fold biases once on the host side: b_ih fully, b_hh's r/z columns into gi;
    # the n-gate b_hh must stay inside r * (h@W_hn + b_hn).
    b_hh = params["b_hh"]                                   # (4, 1, 24)
    b_gi = params["b_ih"] + b_hh.at[:, :, 2 * HID:].set(0.0)  # (4, 1, 24)
    b_hn = b_hh[:, :, 2 * HID:]                             # (4, 1, 8)

    vmem = pl.BlockSpec(memory_space=pltpu.MemorySpace.VMEM)

    out = pl.pallas_call(
        functools.partial(gru_kernel, bp=Bp_pad),
        out_shape=jax.ShapeDtypeStruct((T * Bp_pad, HID), jnp.float32),
        in_specs=[vmem] * 5,
        out_specs=vmem,
        scratch_shapes=[
            pltpu.VMEM((T * Bp_pad, 3 * HID), jnp.float32),  # hoisted gate pre-activations
        ],
    )(x_pad, params["w_ih"], params["w_hh"], b_gi, b_hn)

    # Drop batch padding, then torch: out.view(-1, hid_size * max_seq_len)
    out = jnp.reshape(out, (T, Bp_pad, HID))[:, :Bp, :]
    fwd = jnp.reshape(out, (-1, HID * T))                   # (Bp, 8*T)

    # Pad MLP rows to a sublane multiple for full-occupancy matmuls.
    rows = fwd.shape[0]
    rows_pad = max(8, _round_up(rows, 8))
    fwd_pad = jnp.zeros((rows_pad, HID * T), jnp.float32).at[:rows].set(fwd)

    pred = pl.pallas_call(
        mlp_kernel,
        out_shape=jax.ShapeDtypeStruct((rows_pad, 2), jnp.float32),
        in_specs=[vmem] * 7,
        out_specs=vmem,
    )(fwd_pad, params["w1"], params["b1"], params["w2"], params["b2"],
      params["w3"], params["b3"])
    return pred[:rows]


# ---------------------------------------------------------------------------
# Deterministic parameter init (shapes from GRUClassifier.__init__)
# ---------------------------------------------------------------------------
def init_params(key, max_seq_len):
    T = max_seq_len
    ks = list(jax.random.split(key, 24))

    def u(k, shape, scale):
        return jax.random.uniform(k, shape, jnp.float32, -scale, scale)

    s = 1.0 / float(jnp.sqrt(float(HID)))
    ki = iter(ks)

    w_ih = []
    for layer in range(NUM_LAYERS):
        in_size = 1 if layer == 0 else HID
        w = u(next(ki), (in_size, 3 * HID), s)              # transposed torch weight_ih
        if in_size < HID:                                   # zero-pad to uniform (8,24)
            w = jnp.concatenate([w, jnp.zeros((HID - in_size, 3 * HID), jnp.float32)], axis=0)
        w_ih.append(w)
    w_ih = jnp.stack(w_ih)                                  # (4, 8, 24)
    w_hh = jnp.stack([u(next(ki), (HID, 3 * HID), s) for _ in range(NUM_LAYERS)])  # (4, 8, 24)
    b_ih = jnp.stack([u(next(ki), (1, 3 * HID), s) for _ in range(NUM_LAYERS)])    # (4, 1, 24)
    b_hh = jnp.stack([u(next(ki), (1, 3 * HID), s) for _ in range(NUM_LAYERS)])    # (4, 1, 24)

    d_in = HID * T
    w1 = u(next(ki), (d_in, 256), 1.0 / float(jnp.sqrt(float(d_in))))
    b1 = u(next(ki), (1, 256), 1.0 / float(jnp.sqrt(float(d_in))))
    w2 = u(next(ki), (256, 64), 1.0 / 16.0)
    b2 = u(next(ki), (1, 64), 1.0 / 16.0)
    w3 = u(next(ki), (64, 2), 1.0 / 8.0)
    b3 = u(next(ki), (1, 2), 1.0 / 8.0)

    return dict(w_ih=w_ih, w_hh=w_hh, b_ih=b_ih, b_hh=b_hh,
                w1=w1, b1=b1, w2=w2, b2=b2, w3=w3, b3=b3)


# ---------------------------------------------------------------------------
# Pure-JAX reference (same math, un-folded biases) for a correctness check
# ---------------------------------------------------------------------------
def reference_forward(x, params, max_seq_len):
    T = max_seq_len
    x_seq = jnp.reshape(x.astype(jnp.float32)[..., None], (T, -1, 1))
    Bp = x_seq.shape[1]
    inp = jnp.concatenate([x_seq, jnp.zeros((T, Bp, HID - 1), jnp.float32)], axis=-1)
    for layer in range(NUM_LAYERS):
        wih, whh = params["w_ih"][layer], params["w_hh"][layer]
        bih, bhh = params["b_ih"][layer], params["b_hh"][layer]
        h = jnp.zeros((Bp, HID), jnp.float32)
        outs = []
        for t in range(T):
            gi = inp[t] @ wih + bih
            gh = h @ whh + bhh
            r = jax.nn.sigmoid(gi[:, :HID] + gh[:, :HID])
            z = jax.nn.sigmoid(gi[:, HID:2 * HID] + gh[:, HID:2 * HID])
            n = jnp.tanh(gi[:, 2 * HID:] + r * gh[:, 2 * HID:])
            h = (1.0 - z) * n + z * h
            outs.append(h)
        inp = jnp.stack(outs)
    fwd = jnp.reshape(inp, (-1, HID * T))
    h1 = jnp.maximum(fwd @ params["w1"] + params["b1"], 0.0)
    h2 = jnp.maximum(h1 @ params["w2"] + params["b2"], 0.0)
    return h2 @ params["w3"] + params["b3"]


if __name__ == "__main__":
    MAX_SEQ_LEN = 16
    BATCH = 2

    key = jax.random.PRNGKey(0)
    k_param, k_x = jax.random.split(key)
    params = init_params(k_param, MAX_SEQ_LEN)
    x = jax.random.normal(k_x, (BATCH, MAX_SEQ_LEN), jnp.float32)

    pred = gru_classifier_forward(x, params, MAX_SEQ_LEN)
    pred = jax.block_until_ready(pred)

    ref = reference_forward(x, params, MAX_SEQ_LEN)
    assert pred.shape == (BATCH, 2), pred.shape
    assert jnp.allclose(pred, ref, atol=1e-4, rtol=1e-4), (pred, ref)

    print("KERNEL_OK")
</pallas_src>

<mosaic_0001>
module attributes {stable_mosaic.version = 11 : i64} {
  func.func @gru_kernel(%arg0: memref<128x8xf32, #tpu.memory_space<vmem>>, %arg1: memref<4x8x24xf32, #tpu.memory_space<vmem>>, %arg2: memref<4x8x24xf32, #tpu.memory_space<vmem>>, %arg3: memref<4x1x24xf32, #tpu.memory_space<vmem>>, %arg4: memref<4x1x8xf32, #tpu.memory_space<vmem>>, %arg5: memref<128x8xf32, #tpu.memory_space<vmem>>, %arg6: memref<128x24xf32, #tpu.memory_space<vmem>>) attributes {dimension_semantics = [], scalar_prefetch = 0 : i64, scratch_operands = 1 : i64, tpu.core_type = #tpu.core_type<tc>} {
    %c0 = arith.constant 0 : index
    %c0_0 = arith.constant 0 : index
    %c0_1 = arith.constant 0 : index
    %0 = vector.load %arg1[%c0, %c0_0, %c0_1] : memref<4x8x24xf32, #tpu.memory_space<vmem>>, vector<1x8x24xf32>
    %1 = vector.shape_cast %0 : vector<1x8x24xf32> to vector<8x24xf32>
    %c0_2 = arith.constant 0 : index
    %c0_3 = arith.constant 0 : index
    %c0_4 = arith.constant 0 : index
    %2 = vector.load %arg2[%c0_2, %c0_3, %c0_4] : memref<4x8x24xf32, #tpu.memory_space<vmem>>, vector<1x8x24xf32>
    %3 = vector.shape_cast %2 : vector<1x8x24xf32> to vector<8x24xf32>
    %c0_5 = arith.constant 0 : index
    %c0_6 = arith.constant 0 : index
    %c0_7 = arith.constant 0 : index
    %4 = vector.load %arg4[%c0_5, %c0_6, %c0_7] : memref<4x1x8xf32, #tpu.memory_space<vmem>>, vector<1x1x8xf32>
    %5 = vector.shape_cast %4 : vector<1x1x8xf32> to vector<1x8xf32>
    %c0_8 = arith.constant 0 : index
    %c0_9 = arith.constant 0 : index
    %6 = vector.load %arg0[%c0_8, %c0_9] : memref<128x8xf32, #tpu.memory_space<vmem>>, vector<128x8xf32>
    %cst = arith.constant dense<0.000000e+00> : vector<128x24xf32>
    %7 = tpu.matmul %6, %1, %cst {dimension_numbers = #tpu.dot_dimension_numbers<[1], [0], [0], [1], [0, 0, 1, 1], [], []>} : vector<128x8xf32>, vector<8x24xf32>, vector<128x24xf32> -> vector<128x24xf32>
    %c0_10 = arith.constant 0 : index
    %c0_11 = arith.constant 0 : index
    %c0_12 = arith.constant 0 : index
    %8 = vector.load %arg3[%c0_10, %c0_11, %c0_12] : memref<4x1x24xf32, #tpu.memory_space<vmem>>, vector<1x1x24xf32>
    %9 = vector.shape_cast %8 : vector<1x1x24xf32> to vector<1x24xf32>
    %10 = vector.broadcast %9 : vector<1x24xf32> to vector<128x24xf32>
    %11 = arith.addf %7, %10 : vector<128x24xf32>
    %c0_13 = arith.constant 0 : index
    %c0_14 = arith.constant 0 : index
    %12 = vector.load %arg6[%c0_13, %c0_14] : memref<128x24xf32, #tpu.memory_space<vmem>>, vector<128x24xf32>
    tpu.vector_store %arg6[%c0_13, %c0_14], %11 {strides = array<i32>} : memref<128x24xf32, #tpu.memory_space<vmem>>, vector<128x24xf32>,
    %cst_15 = arith.constant 0.000000e+00 : f32
    %13 = vector.broadcast %cst_15 : f32 to vector<8x8xf32>
    %c0_i32 = arith.constant 0 : i32
    %c16_i32 = arith.constant 16 : i32
    %14 = arith.addi %c0_i32, %c16_i32 : i32
    %c1_i32 = arith.constant 1 : i32
    %15 = scf.for %arg7 = %c0_i32 to %14 step %c1_i32 iter_args(%arg8 = %13) -> (vector<8x8xf32>)  : i32 {
      %c8_i32 = arith.constant 8 : i32
      %64 = arith.muli %arg7, %c8_i32 : i32
      %65 = tpu.assume_multiple %64, 8 : i32
      %66 = arith.index_cast %65 : i32 to index
      %c0_80 = arith.constant 0 : index
      %67 = vector.load %arg6[%66, %c0_80] : memref<128x24xf32, #tpu.memory_space<vmem>>, vector<8x24xf32>
      %cst_81 = arith.constant dense<0.000000e+00> : vector<8x24xf32>
      %68 = tpu.matmul %arg8, %3, %cst_81 {dimension_numbers = #tpu.dot_dimension_numbers<[1], [0], [0], [1], [0, 0, 1, 1], [], []>} : vector<8x8xf32>, vector<8x24xf32>, vector<8x24xf32> -> vector<8x24xf32>
      %69 = vector.extract_strided_slice %67 {offsets = [0, 0], sizes = [8, 8], strides = [1, 1]} : vector<8x24xf32> to vector<8x8xf32>
      %70 = vector.extract_strided_slice %68 {offsets = [0, 0], sizes = [8, 8], strides = [1, 1]} : vector<8x24xf32> to vector<8x8xf32>
      %71 = arith.addf %69, %70 : vector<8x8xf32>
      %72 = arith.negf %71 : vector<8x8xf32>
      %73 = math.exp %72 : vector<8x8xf32>
      %cst_82 = arith.constant 1.000000e+00 : f32
      %74 = vector.broadcast %cst_82 : f32 to vector<8x8xf32>
      %75 = arith.addf %74, %73 : vector<8x8xf32>
      %76 = arith.divf %74, %75 : vector<8x8xf32>
      %77 = vector.extract_strided_slice %67 {offsets = [0, 8], sizes = [8, 8], strides = [1, 1]} : vector<8x24xf32> to vector<8x8xf32>
      %78 = vector.extract_strided_slice %68 {offsets = [0, 8], sizes = [8, 8], strides = [1, 1]} : vector<8x24xf32> to vector<8x8xf32>
      %79 = arith.addf %77, %78 : vector<8x8xf32>
      %80 = arith.negf %79 : vector<8x8xf32>
      %81 = math.exp %80 : vector<8x8xf32>
      %cst_83 = arith.constant 1.000000e+00 : f32
      %82 = vector.broadcast %cst_83 : f32 to vector<8x8xf32>
      %83 = arith.addf %82, %81 : vector<8x8xf32>
      %84 = arith.divf %82, %83 : vector<8x8xf32>
      %85 = vector.extract_strided_slice %67 {offsets = [0, 16], sizes = [8, 8], strides = [1, 1]} : vector<8x24xf32> to vector<8x8xf32>
      %86 = vector.extract_strided_slice %68 {offsets = [0, 16], sizes = [8, 8], strides = [1, 1]} : vector<8x24xf32> to vector<8x8xf32>
      %87 = vector.broadcast %5 : vector<1x8xf32> to vector<8x8xf32>
      %88 = arith.addf %86, %87 : vector<8x8xf32>
      %89 = arith.mulf %76, %88 : vector<8x8xf32>
      %90 = arith.addf %85, %89 : vector<8x8xf32>
      %91 = math.tanh %90 : vector<8x8xf32>
      %cst_84 = arith.constant 1.000000e+00 : f32
      %92 = vector.broadcast %cst_84 : f32 to vector<8x8xf32>
      %93 = arith.subf %92, %84 : vector<8x8xf32>
      %94 = arith.mulf %93, %91 : vector<8x8xf32>
      %95 = arith.mulf %84, %arg8 : vector<8x8xf32>
      %96 = arith.addf %94, %95 : vector<8x8xf32>
      %97 = arith.index_cast %65 : i32 to index
      %c0_85 = arith.constant 0 : index
      %98 = vector.load %arg5[%97, %c0_85] : memref<128x8xf32, #tpu.memory_space<vmem>>, vector<8x8xf32>
      tpu.vector_store %arg5[%97, %c0_85], %96 {strides = array<i32>} : memref<128x8xf32, #tpu.memory_space<vmem>>, vector<8x8xf32>,
      scf.yield %96 : vector<8x8xf32>
    }
    %c16_i32_16 = arith.constant 16 : i32
    %c1 = arith.constant 1 : index
    %c0_17 = arith.constant 0 : index
    %c0_18 = arith.constant 0 : index
    %16 = vector.load %arg1[%c1, %c0_17, %c0_18] : memref<4x8x24xf32, #tpu.memory_space<vmem>>, vector<1x8x24xf32>
    %17 = vector.shape_cast %16 : vector<1x8x24xf32> to vector<8x24xf32>
    %c1_19 = arith.constant 1 : index
    %c0_20 = arith.constant 0 : index
    %c0_21 = arith.constant 0 : index
    %18 = vector.load %arg2[%c1_19, %c0_20, %c0_21] : memref<4x8x24xf32, #tpu.memory_space<vmem>>, vector<1x8x24xf32>
    %19 = vector.shape_cast %18 : vector<1x8x24xf32> to vector<8x24xf32>
    %c1_22 = arith.constant 1 : index
    %c0_23 = arith.constant 0 : index
    %c0_24 = arith.constant 0 : index
    %20 = vector.load %arg4[%c1_22, %c0_23, %c0_24] : memref<4x1x8xf32, #tpu.memory_space<vmem>>, vector<1x1x8xf32>
    %21 = vector.shape_cast %20 : vector<1x1x8xf32> to vector<1x8xf32>
    %c0_25 = arith.constant 0 : index
    %c0_26 = arith.constant 0 : index
    %22 = vector.load %arg5[%c0_25, %c0_26] : memref<128x8xf32, #tpu.memory_space<vmem>>, vector<128x8xf32>
    %cst_27 = arith.constant dense<0.000000e+00> : vector<128x24xf32>
    %23 = tpu.matmul %22, %17, %cst_27 {dimension_numbers = #tpu.dot_dimension_numbers<[1], [0], [0], [1], [0, 0, 1, 1], [], []>} : vector<128x8xf32>, vector<8x24xf32>, vector<128x24xf32> -> vector<128x24xf32>
    %c1_28 = arith.constant 1 : index
    %c0_29 = arith.constant 0 : index
    %c0_30 = arith.constant 0 : index
    %24 = vector.load %arg3[%c1_28, %c0_29, %c0_30] : memref<4x1x24xf32, #tpu.memory_space<vmem>>, vector<1x1x24xf32>
    %25 = vector.shape_cast %24 : vector<1x1x24xf32> to vector<1x24xf32>
    %26 = vector.broadcast %25 : vector<1x24xf32> to vector<128x24xf32>
    %27 = arith.addf %23, %26 : vector<128x24xf32>
    %c0_31 = arith.constant 0 : index
    %c0_32 = arith.constant 0 : index
    %28 = vector.load %arg6[%c0_31, %c0_32] : memref<128x24xf32, #tpu.memory_space<vmem>>, vector<128x24xf32>
    tpu.vector_store %arg6[%c0_31, %c0_32], %27 {strides = array<i32>} : memref<128x24xf32, #tpu.memory_space<vmem>>, vector<128x24xf32>,
    %cst_33 = arith.constant 0.000000e+00 : f32
    %29 = vector.broadcast %cst_33 : f32 to vector<8x8xf32>
    %c0_i32_34 = arith.constant 0 : i32
    %c16_i32_35 = arith.constant 16 : i32
    %30 = arith.addi %c0_i32_34, %c16_i32_35 : i32
    %c1_i32_36 = arith.constant 1 : i32
    %31 = scf.for %arg7 = %c0_i32_34 to %30 step %c1_i32_36 iter_args(%arg8 = %29) -> (vector<8x8xf32>)  : i32 {
      %c8_i32 = arith.constant 8 : i32
      %64 = arith.muli %arg7, %c8_i32 : i32
      %65 = tpu.assume_multiple %64, 8 : i32
      %66 = arith.index_cast %65 : i32 to index
      %c0_80 = arith.constant 0 : index
      %67 = vector.load %arg6[%66, %c0_80] : memref<128x24xf32, #tpu.memory_space<vmem>>, vector<8x24xf32>
      %cst_81 = arith.constant dense<0.000000e+00> : vector<8x24xf32>
      %68 = tpu.matmul %arg8, %19, %cst_81 {dimension_numbers = #tpu.dot_dimension_numbers<[1], [0], [0], [1], [0, 0, 1, 1], [], []>} : vector<8x8xf32>, vector<8x24xf32>, vector<8x24xf32> -> vector<8x24xf32>
      %69 = vector.extract_strided_slice %67 {offsets = [0, 0], sizes = [8, 8], strides = [1, 1]} : vector<8x24xf32> to vector<8x8xf32>
      %70 = vector.extract_strided_slice %68 {offsets = [0, 0], sizes = [8, 8], strides = [1, 1]} : vector<8x24xf32> to vector<8x8xf32>
      %71 = arith.addf %69, %70 : vector<8x8xf32>
      %72 = arith.negf %71 : vector<8x8xf32>
      %73 = math.exp %72 : vector<8x8xf32>
      %cst_82 = arith.constant 1.000000e+00 : f32
      %74 = vector.broadcast %cst_82 : f32 to vector<8x8xf32>
      %75 = arith.addf %74, %73 : vector<8x8xf32>
      %76 = arith.divf %74, %75 : vector<8x8xf32>
      %77 = vector.extract_strided_slice %67 {offsets = [0, 8], sizes = [8, 8], strides = [1, 1]} : vector<8x24xf32> to vector<8x8xf32>
      %78 = vector.extract_strided_slice %68 {offsets = [0, 8], sizes = [8, 8], strides = [1, 1]} : vector<8x24xf32> to vector<8x8xf32>
      %79 = arith.addf %77, %78 : vector<8x8xf32>
      %80 = arith.negf %79 : vector<8x8xf32>
      %81 = math.exp %80 : vector<8x8xf32>
      %cst_83 = arith.constant 1.000000e+00 : f32
      %82 = vector.broadcast %cst_83 : f32 to vector<8x8xf32>
      %83 = arith.addf %82, %81 : vector<8x8xf32>
      %84 = arith.divf %82, %83 : vector<8x8xf32>
      %85 = vector.extract_strided_slice %67 {offsets = [0, 16], sizes = [8, 8], strides = [1, 1]} : vector<8x24xf32> to vector<8x8xf32>
      %86 = vector.extract_strided_slice %68 {offsets = [0, 16], sizes = [8, 8], strides = [1, 1]} : vector<8x24xf32> to vector<8x8xf32>
      %87 = vector.broadcast %21 : vector<1x8xf32> to vector<8x8xf32>
      %88 = arith.addf %86, %87 : vector<8x8xf32>
      %89 = arith.mulf %76, %88 : vector<8x8xf32>
      %90 = arith.addf %85, %89 : vector<8x8xf32>
      %91 = math.tanh %90 : vector<8x8xf32>
      %cst_84 = arith.constant 1.000000e+00 : f32
      %92 = vector.broadcast %cst_84 : f32 to vector<8x8xf32>
      %93 = arith.subf %92, %84 : vector<8x8xf32>
      %94 = arith.mulf %93, %91 : vector<8x8xf32>
      %95 = arith.mulf %84, %arg8 : vector<8x8xf32>
      %96 = arith.addf %94, %95 : vector<8x8xf32>
      %97 = arith.index_cast %65 : i32 to index
      %c0_85 = arith.constant 0 : index
      %98 = vector.load %arg5[%97, %c0_85] : memref<128x8xf32, #tpu.memory_space<vmem>>, vector<8x8xf32>
      tpu.vector_store %arg5[%97, %c0_85], %96 {strides = array<i32>} : memref<128x8xf32, #tpu.memory_space<vmem>>, vector<8x8xf32>,
      scf.yield %96 : vector<8x8xf32>
    }
    %c16_i32_37 = arith.constant 16 : i32
    %c2 = arith.constant 2 : index
    %c0_38 = arith.constant 0 : index
    %c0_39 = arith.constant 0 : index
    %32 = vector.load %arg1[%c2, %c0_38, %c0_39] : memref<4x8x24xf32, #tpu.memory_space<vmem>>, vector<1x8x24xf32>
    %33 = vector.shape_cast %32 : vector<1x8x24xf32> to vector<8x24xf32>
    %c2_40 = arith.constant 2 : index
    %c0_41 = arith.constant 0 : index
    %c0_42 = arith.constant 0 : index
    %34 = vector.load %arg2[%c2_40, %c0_41, %c0_42] : memref<4x8x24xf32, #tpu.memory_space<vmem>>, vector<1x8x24xf32>
    %35 = vector.shape_cast %34 : vector<1x8x24xf32> to vector<8x24xf32>
    %c2_43 = arith.constant 2 : index
    %c0_44 = arith.constant 0 : index
    %c0_45 = arith.constant 0 : index
    %36 = vector.load %arg4[%c2_43, %c0_44, %c0_45] : memref<4x1x8xf32, #tpu.memory_space<vmem>>, vector<1x1x8xf32>
    %37 = vector.shape_cast %36 : vector<1x1x8xf32> to vector<1x8xf32>
    %c0_46 = arith.constant 0 : index
    %c0_47 = arith.constant 0 : index
    %38 = vector.load %arg5[%c0_46, %c0_47] : memref<128x8xf32, #tpu.memory_space<vmem>>, vector<128x8xf32>
    %cst_48 = arith.constant dense<0.000000e+00> : vector<128x24xf32>
    %39 = tpu.matmul %38, %33, %cst_48 {dimension_numbers = #tpu.dot_dimension_numbers<[1], [0], [0], [1], [0, 0, 1, 1], [], []>} : vector<128x8xf32>, vector<8x24xf32>, vector<128x24xf32> -> vector<128x24xf32>
    %c2_49 = arith.constant 2 : index
    %c0_50 = arith.constant 0 : index
    %c0_51 = arith.constant 0 : index
    %40 = vector.load %arg3[%c2_49, %c0_50, %c0_51] : memref<4x1x24xf32, #tpu.memory_space<vmem>>, vector<1x1x24xf32>
    %41 = vector.shape_cast %40 : vector<1x1x24xf32> to vector<1x24xf32>
    %42 = vector.broadcast %41 : vector<1x24xf32> to vector<128x24xf32>
    %43 = arith.addf %39, %42 : vector<128x24xf32>
    %c0_52 = arith.constant 0 : index
    %c0_53 = arith.constant 0 : index
    %44 = vector.load %arg6[%c0_52, %c0_53] : memref<128x24xf32, #tpu.memory_space<vmem>>, vector<128x24xf32>
    tpu.vector_store %arg6[%c0_52, %c0_53], %43 {strides = array<i32>} : memref<128x24xf32, #tpu.memory_space<vmem>>, vector<128x24xf32>,
    %cst_54 = arith.constant 0.000000e+00 : f32
    %45 = vector.broadcast %cst_54 : f32 to vector<8x8xf32>
    %c0_i32_55 = arith.constant 0 : i32
    %c16_i32_56 = arith.constant 16 : i32
    %46 = arith.addi %c0_i32_55, %c16_i32_56 : i32
    %c1_i32_57 = arith.constant 1 : i32
    %47 = scf.for %arg7 = %c0_i32_55 to %46 step %c1_i32_57 iter_args(%arg8 = %45) -> (vector<8x8xf32>)  : i32 {
      %c8_i32 = arith.constant 8 : i32
      %64 = arith.muli %arg7, %c8_i32 : i32
      %65 = tpu.assume_multiple %64, 8 : i32
      %66 = arith.index_cast %65 : i32 to index
      %c0_80 = arith.constant 0 : index
      %67 = vector.load %arg6[%66, %c0_80] : memref<128x24xf32, #tpu.memory_space<vmem>>, vector<8x24xf32>
      %cst_81 = arith.constant dense<0.000000e+00> : vector<8x24xf32>
      %68 = tpu.matmul %arg8, %35, %cst_81 {dimension_numbers = #tpu.dot_dimension_numbers<[1], [0], [0], [1], [0, 0, 1, 1], [], []>} : vector<8x8xf32>, vector<8x24xf32>, vector<8x24xf32> -> vector<8x24xf32>
      %69 = vector.extract_strided_slice %67 {offsets = [0, 0], sizes = [8, 8], strides = [1, 1]} : vector<8x24xf32> to vector<8x8xf32>
      %70 = vector.extract_strided_slice %68 {offsets = [0, 0], sizes = [8, 8], strides = [1, 1]} : vector<8x24xf32> to vector<8x8xf32>
      %71 = arith.addf %69, %70 : vector<8x8xf32>
      %72 = arith.negf %71 : vector<8x8xf32>
      %73 = math.exp %72 : vector<8x8xf32>
      %cst_82 = arith.constant 1.000000e+00 : f32
      %74 = vector.broadcast %cst_82 : f32 to vector<8x8xf32>
      %75 = arith.addf %74, %73 : vector<8x8xf32>
      %76 = arith.divf %74, %75 : vector<8x8xf32>
      %77 = vector.extract_strided_slice %67 {offsets = [0, 8], sizes = [8, 8], strides = [1, 1]} : vector<8x24xf32> to vector<8x8xf32>
      %78 = vector.extract_strided_slice %68 {offsets = [0, 8], sizes = [8, 8], strides = [1, 1]} : vector<8x24xf32> to vector<8x8xf32>
      %79 = arith.addf %77, %78 : vector<8x8xf32>
      %80 = arith.negf %79 : vector<8x8xf32>
      %81 = math.exp %80 : vector<8x8xf32>
      %cst_83 = arith.constant 1.000000e+00 : f32
      %82 = vector.broadcast %cst_83 : f32 to vector<8x8xf32>
      %83 = arith.addf %82, %81 : vector<8x8xf32>
      %84 = arith.divf %82, %83 : vector<8x8xf32>
      %85 = vector.extract_strided_slice %67 {offsets = [0, 16], sizes = [8, 8], strides = [1, 1]} : vector<8x24xf32> to vector<8x8xf32>
      %86 = vector.extract_strided_slice %68 {offsets = [0, 16], sizes = [8, 8], strides = [1, 1]} : vector<8x24xf32> to vector<8x8xf32>
      %87 = vector.broadcast %37 : vector<1x8xf32> to vector<8x8xf32>
      %88 = arith.addf %86, %87 : vector<8x8xf32>
      %89 = arith.mulf %76, %88 : vector<8x8xf32>
      %90 = arith.addf %85, %89 : vector<8x8xf32>
      %91 = math.tanh %90 : vector<8x8xf32>
      %cst_84 = arith.constant 1.000000e+00 : f32
      %92 = vector.broadcast %cst_84 : f32 to vector<8x8xf32>
      %93 = arith.subf %92, %84 : vector<8x8xf32>
      %94 = arith.mulf %93, %91 : vector<8x8xf32>
      %95 = arith.mulf %84, %arg8 : vector<8x8xf32>
      %96 = arith.addf %94, %95 : vector<8x8xf32>
      %97 = arith.index_cast %65 : i32 to index
      %c0_85 = arith.constant 0 : index
      %98 = vector.load %arg5[%97, %c0_85] : memref<128x8xf32, #tpu.memory_space<vmem>>, vector<8x8xf32>
      tpu.vector_store %arg5[%97, %c0_85], %96 {strides = array<i32>} : memref<128x8xf32, #tpu.memory_space<vmem>>, vector<8x8xf32>,
      scf.yield %96 : vector<8x8xf32>
    }
    %c16_i32_58 = arith.constant 16 : i32
    %c3 = arith.constant 3 : index
    %c0_59 = arith.constant 0 : index
    %c0_60 = arith.constant 0 : index
    %48 = vector.load %arg1[%c3, %c0_59, %c0_60] : memref<4x8x24xf32, #tpu.memory_space<vmem>>, vector<1x8x24xf32>
    %49 = vector.shape_cast %48 : vector<1x8x24xf32> to vector<8x24xf32>
    %c3_61 = arith.constant 3 : index
    %c0_62 = arith.constant 0 : index
    %c0_63 = arith.constant 0 : index
    %50 = vector.load %arg2[%c3_61, %c0_62, %c0_63] : memref<4x8x24xf32, #tpu.memory_space<vmem>>, vector<1x8x24xf32>
    %51 = vector.shape_cast %50 : vector<1x8x24xf32> to vector<8x24xf32>
    %c3_64 = arith.constant 3 : index
    %c0_65 = arith.constant 0 : index
    %c0_66 = arith.constant 0 : index
    %52 = vector.load %arg4[%c3_64, %c0_65, %c0_66] : memref<4x1x8xf32, #tpu.memory_space<vmem>>, vector<1x1x8xf32>
    %53 = vector.shape_cast %52 : vector<1x1x8xf32> to vector<1x8xf32>
    %c0_67 = arith.constant 0 : index
    %c0_68 = arith.constant 0 : index
    %54 = vector.load %arg5[%c0_67, %c0_68] : memref<128x8xf32, #tpu.memory_space<vmem>>, vector<128x8xf32>
    %cst_69 = arith.constant dense<0.000000e+00> : vector<128x24xf32>
    %55 = tpu.matmul %54, %49, %cst_69 {dimension_numbers = #tpu.dot_dimension_numbers<[1], [0], [0], [1], [0, 0, 1, 1], [], []>} : vector<128x8xf32>, vector<8x24xf32>, vector<128x24xf32> -> vector<128x24xf32>
    %c3_70 = arith.constant 3 : index
    %c0_71 = arith.constant 0 : index
    %c0_72 = arith.constant 0 : index
    %56 = vector.load %arg3[%c3_70, %c0_71, %c0_72] : memref<4x1x24xf32, #tpu.memory_space<vmem>>, vector<1x1x24xf32>
    %57 = vector.shape_cast %56 : vector<1x1x24xf32> to vector<1x24xf32>
    %58 = vector.broadcast %57 : vector<1x24xf32> to vector<128x24xf32>
    %59 = arith.addf %55, %58 : vector<128x24xf32>
    %c0_73 = arith.constant 0 : index
    %c0_74 = arith.constant 0 : index
    %60 = vector.load %arg6[%c0_73, %c0_74] : memref<128x24xf32, #tpu.memory_space<vmem>>, vector<128x24xf32>
    tpu.vector_store %arg6[%c0_73, %c0_74], %59 {strides = array<i32>} : memref<128x24xf32, #tpu.memory_space<vmem>>, vector<128x24xf32>,
    %cst_75 = arith.constant 0.000000e+00 : f32
    %61 = vector.broadcast %cst_75 : f32 to vector<8x8xf32>
    %c0_i32_76 = arith.constant 0 : i32
    %c16_i32_77 = arith.constant 16 : i32
    %62 = arith.addi %c0_i32_76, %c16_i32_77 : i32
    %c1_i32_78 = arith.constant 1 : i32
    %63 = scf.for %arg7 = %c0_i32_76 to %62 step %c1_i32_78 iter_args(%arg8 = %61) -> (vector<8x8xf32>)  : i32 {
      %c8_i32 = arith.constant 8 : i32
      %64 = arith.muli %arg7, %c8_i32 : i32
      %65 = tpu.assume_multiple %64, 8 : i32
      %66 = arith.index_cast %65 : i32 to index
      %c0_80 = arith.constant 0 : index
      %67 = vector.load %arg6[%66, %c0_80] : memref<128x24xf32, #tpu.memory_space<vmem>>, vector<8x24xf32>
      %cst_81 = arith.constant dense<0.000000e+00> : vector<8x24xf32>
      %68 = tpu.matmul %arg8, %51, %cst_81 {dimension_numbers = #tpu.dot_dimension_numbers<[1], [0], [0], [1], [0, 0, 1, 1], [], []>} : vector<8x8xf32>, vector<8x24xf32>, vector<8x24xf32> -> vector<8x24xf32>
      %69 = vector.extract_strided_slice %67 {offsets = [0, 0], sizes = [8, 8], strides = [1, 1]} : vector<8x24xf32> to vector<8x8xf32>
      %70 = vector.extract_strided_slice %68 {offsets = [0, 0], sizes = [8, 8], strides = [1, 1]} : vector<8x24xf32> to vector<8x8xf32>
      %71 = arith.addf %69, %70 : vector<8x8xf32>
      %72 = arith.negf %71 : vector<8x8xf32>
      %73 = math.exp %72 : vector<8x8xf32>
      %cst_82 = arith.constant 1.000000e+00 : f32
      %74 = vector.broadcast %cst_82 : f32 to vector<8x8xf32>
      %75 = arith.addf %74, %73 : vector<8x8xf32>
      %76 = arith.divf %74, %75 : vector<8x8xf32>
      %77 = vector.extract_strided_slice %67 {offsets = [0, 8], sizes = [8, 8], strides = [1, 1]} : vector<8x24xf32> to vector<8x8xf32>
      %78 = vector.extract_strided_slice %68 {offsets = [0, 8], sizes = [8, 8], strides = [1, 1]} : vector<8x24xf32> to vector<8x8xf32>
      %79 = arith.addf %77, %78 : vector<8x8xf32>
      %80 = arith.negf %79 : vector<8x8xf32>
      %81 = math.exp %80 : vector<8x8xf32>
      %cst_83 = arith.constant 1.000000e+00 : f32
      %82 = vector.broadcast %cst_83 : f32 to vector<8x8xf32>
      %83 = arith.addf %82, %81 : vector<8x8xf32>
      %84 = arith.divf %82, %83 : vector<8x8xf32>
      %85 = vector.extract_strided_slice %67 {offsets = [0, 16], sizes = [8, 8], strides = [1, 1]} : vector<8x24xf32> to vector<8x8xf32>
      %86 = vector.extract_strided_slice %68 {offsets = [0, 16], sizes = [8, 8], strides = [1, 1]} : vector<8x24xf32> to vector<8x8xf32>
      %87 = vector.broadcast %53 : vector<1x8xf32> to vector<8x8xf32>
      %88 = arith.addf %86, %87 : vector<8x8xf32>
      %89 = arith.mulf %76, %88 : vector<8x8xf32>
      %90 = arith.addf %85, %89 : vector<8x8xf32>
      %91 = math.tanh %90 : vector<8x8xf32>
      %cst_84 = arith.constant 1.000000e+00 : f32
      %92 = vector.broadcast %cst_84 : f32 to vector<8x8xf32>
      %93 = arith.subf %92, %84 : vector<8x8xf32>
      %94 = arith.mulf %93, %91 : vector<8x8xf32>
      %95 = arith.mulf %84, %arg8 : vector<8x8xf32>
      %96 = arith.addf %94, %95 : vector<8x8xf32>
      %97 = arith.index_cast %65 : i32 to index
      %c0_85 = arith.constant 0 : index
      %98 = vector.load %arg5[%97, %c0_85] : memref<128x8xf32, #tpu.memory_space<vmem>>, vector<8x8xf32>
      tpu.vector_store %arg5[%97, %c0_85], %96 {strides = array<i32>} : memref<128x8xf32, #tpu.memory_space<vmem>>, vector<8x8xf32>,
      scf.yield %96 : vector<8x8xf32>
    }
    %c16_i32_79 = arith.constant 16 : i32
    return
  }
}

</mosaic_0001>

<llo_original>
// kernel: tpu_custom_call.1
$region0: #{tpu_custom_call.1}
  #allocation0 [shape = 'u32[]', space=smem, size = 0x4, offset = 0x4, fixed_abs, tag = 'smem constant byte address 0x4 - core index']
  #allocation1 [shape = 'u32[72,128]{1,0:T(1,128)}', space=vmem, size = 0x9000, scoped, tag = 'internal scratch']
  #allocation2 [shape = 'f32[128,24]{1,0:T(8,128)}', space=vmem, size = 0x10000, scoped, tag = 'scratch operand']
  %s0 = inlined_call_operand.vmem [shape: f32[128,8], index: 0, kind: input, shape index: {}]
  %s1 = inlined_call_operand.vmem [shape: f32[4,8,24], index: 1, kind: input, shape index: {}]
  %s2 = inlined_call_operand.vmem [shape: f32[4,8,24], index: 2, kind: input, shape index: {}]
  %s3 = inlined_call_operand.vmem [shape: f32[4,1,24], index: 3, kind: input, shape index: {}]
  %s4 = inlined_call_operand.vmem [shape: f32[4,1,8], index: 4, kind: input, shape index: {}]
  %s5 = inlined_call_operand.vmem [shape: f32[128,8], index: 5, kind: output, shape index: {}]
  %s6 = sld [smem:[#allocation0]]
  $region58: #{tpu_custom_call.1} parent=0
    _
  %s8 = ssub.s32 1, %s6
  %s9 = scalar_select 0, %s8, %s6
  // Predicated region
  $region2: #{tpu_custom_call.1} parent=0 // pred_check
    _
  $region3: #{tpu_custom_call.1} parent=0 // pred_check_branch
    %11 = sbr.rel (0) target = $region5
  $region4: #{tpu_custom_call.1} parent=0 // pred_region
    _
  $region5: #{tpu_custom_call.1} parent=0 // pred_fallthru
    _
  // Predicated region
  $region6: #{tpu_custom_call.1} parent=0 // pred_check
    _
  $region7: #{tpu_custom_call.1} parent=0 // pred_check_branch
    %13 = sbr.rel (0) target = $region9
  $region8: #{tpu_custom_call.1} parent=0 // pred_region
    _
  $region9: #{tpu_custom_call.1} parent=0 // pred_fallthru
    _
  // Predicated region
  $region10: #{tpu_custom_call.1} parent=0 // pred_check
    _
  $region11: #{tpu_custom_call.1} parent=0 // pred_check_branch
    %15 = sbr.rel (0) target = $region13
  $region12: #{tpu_custom_call.1} parent=0 // pred_region
    _
  $region13: #{tpu_custom_call.1} parent=0 // pred_fallthru
    _
  // Predicated region
  $region14: #{tpu_custom_call.1} parent=0 // pred_check
    _
  $region15: #{tpu_custom_call.1} parent=0 // pred_check_branch
    %17 = sbr.rel (0) target = $region17
  $region16: #{tpu_custom_call.1} parent=0 // pred_region
    _
  $region17: #{tpu_custom_call.1} parent=0 // pred_fallthru
    _
  // Predicated region
  $region18: #{tpu_custom_call.1} parent=0 // pred_check
    _
  $region19: #{tpu_custom_call.1} parent=0 // pred_check_branch
    %19 = sbr.rel (0) target = $region21
  $region20: #{tpu_custom_call.1} parent=0 // pred_region
    _
  $region21: #{tpu_custom_call.1} parent=0 // pred_fallthru
    _
  %v20 = vld [vmem:[%s1] sm:$0xff]
  %v21 = vld [vmem:[%s2] sm:$0xff]
  %v22 = vld [vmem:[%s4] sm:$0x1]
  %v23 = vld [vmem:[%s0] sm:$0xff]
  %v24 = vld [vmem:[%s0 + $0x8] sm:$0xff]
  %v25 = vld [vmem:[%s0 + $0x10] sm:$0xff]
  %v26 = vld [vmem:[%s0 + $0x18] sm:$0xff]
  %v27 = vld [vmem:[%s0 + $0x20] sm:$0xff]
  %v28 = vld [vmem:[%s0 + $0x28] sm:$0xff]
  %v29 = vld [vmem:[%s0 + $0x30] sm:$0xff]
  %v30 = vld [vmem:[%s0 + $0x38] sm:$0xff]
  %v31 = vld [vmem:[%s0 + $0x40] sm:$0xff]
  %v32 = vld [vmem:[%s0 + $0x48] sm:$0xff]
  %v33 = vld [vmem:[%s0 + $0x50] sm:$0xff]
  %v34 = vld [vmem:[%s0 + $0x58] sm:$0xff]
  %v35 = vld [vmem:[%s0 + $0x60] sm:$0xff]
  %v36 = vld [vmem:[%s0 + $0x68] sm:$0xff]
  %v37 = vld [vmem:[%s0 + $0x70] sm:$0xff]
  %v38 = vld [vmem:[%s0 + $0x78] sm:$0xff]
  %v39 = vld [vmem:[%s3] sm:$0x1]
  %v41 = vperm.slane %v39, 0
  %vm43 = vcmask 64512
  %v45 = vsel %vm43, %v23, 0
  %v48 = vsel %vm43, %v24, 0
  %v51 = vsel %vm43, %v25, 0
  %v54 = vsel %vm43, %v26, 0
  %v57 = vsel %vm43, %v27, 0
  %v60 = vsel %vm43, %v28, 0
  %v63 = vsel %vm43, %v29, 0
  %v66 = vsel %vm43, %v30, 0
  %v69 = vsel %vm43, %v31, 0
  %v72 = vsel %vm43, %v32, 0
  %v75 = vsel %vm43, %v33, 0
  %v78 = vsel %vm43, %v34, 0
  %v81 = vsel %vm43, %v35, 0
  %v84 = vsel %vm43, %v36, 0
  %v87 = vsel %vm43, %v37, 0
  %v90 = vsel %vm43, %v38, 0
  %92 = vmatpush.msra.mxu0 0.0
  %93 = vmatpush.msra.mxu0 0.0
  %94 = vmatpush.msra.mxu0 0.0
  %95 = vmatpush.msra.mxu0 0.0
  %96 = vmatpush.msra.mxu0 0.0
  %97 = vmatpush.msra.mxu0 0.0
  %98 = vmatpush.msra.mxu0 0.0
  %99 = vmatpush.msra.mxu0 0.0
  %100 = vmatpush.msra.mxu0 0.0
  %101 = vmatpush.msra.mxu0 0.0
  %102 = vmatpush.msra.mxu0 0.0
  %103 = vmatpush.msra.mxu0 0.0
  %104 = vmatpush.msra.mxu0 0.0
  %105 = vmatpush.msra.mxu0 0.0
  %106 = vmatpush.msra.mxu0 0.0
  %107 = vmatpush.msra.mxu0 %v20
  %108 = vmatmul.f32.gmra.mxu0 %v45
  %v109 = vpop.f32.mrf.mxu0
  %v110 = vadd.f32 %v41, %v109
  %111 = vmatmul.f32.gmra.mxu0 %v48
  %v112 = vpop.f32.mrf.mxu0
  %v113 = vadd.f32 %v41, %v112
  %114 = vmatmul.f32.gmra.mxu0 %v51
  %v115 = vpop.f32.mrf.mxu0
  %v116 = vadd.f32 %v41, %v115
  %117 = vmatmul.f32.gmra.mxu0 %v54
  %v118 = vpop.f32.mrf.mxu0
  %v119 = vadd.f32 %v41, %v118
  %120 = vmatmul.f32.gmra.mxu0 %v57
  %v121 = vpop.f32.mrf.mxu0
  %v122 = vadd.f32 %v41, %v121
  %123 = vmatmul.f32.gmra.mxu0 %v60
  %v124 = vpop.f32.mrf.mxu0
  %v125 = vadd.f32 %v41, %v124
  %126 = vmatmul.f32.gmra.mxu0 %v63
  %v127 = vpop.f32.mrf.mxu0
  %v128 = vadd.f32 %v41, %v127
  %129 = vmatmul.f32.gmra.mxu0 %v66
  %v130 = vpop.f32.mrf.mxu0
  %v131 = vadd.f32 %v41, %v130
  %132 = vmatmul.f32.gmra.mxu0 %v69
  %v133 = vpop.f32.mrf.mxu0
  %v134 = vadd.f32 %v41, %v133
  %135 = vmatmul.f32.gmra.mxu0 %v72
  %v136 = vpop.f32.mrf.mxu0
  %v137 = vadd.f32 %v41, %v136
  %138 = vmatmul.f32.gmra.mxu0 %v75
  %v139 = vpop.f32.mrf.mxu0
  %v140 = vadd.f32 %v41, %v139
  %141 = vmatmul.f32.gmra.mxu0 %v78
  %v142 = vpop.f32.mrf.mxu0
  %v143 = vadd.f32 %v41, %v142
  %144 = vmatmul.f32.gmra.mxu0 %v81
  %v145 = vpop.f32.mrf.mxu0
  %v146 = vadd.f32 %v41, %v145
  %147 = vmatmul.f32.gmra.mxu0 %v84
  %v148 = vpop.f32.mrf.mxu0
  %v149 = vadd.f32 %v41, %v148
  %150 = vmatmul.f32.gmra.mxu0 %v87
  %v151 = vpop.f32.mrf.mxu0
  %v152 = vadd.f32 %v41, %v151
  %153 = vmatmul.f32.gmra.mxu0 %v90
  %v154 = vpop.f32.mrf.mxu0
  %v155 = vadd.f32 %v41, %v154
  %156 = vdwg.mxu0
  %vm157 = vcmask 195584
  %158 = vst.msk [vmem:[#allocation2] sm:$0xff] %vm157, %v110
  %159 = vst.msk [vmem:[#allocation2 + $0x8] sm:$0xff] %vm157, %v113
  %160 = vst.msk [vmem:[#allocation2 + $0x10] sm:$0xff] %vm157, %v116
  %161 = vst.msk [vmem:[#allocation2 + $0x18] sm:$0xff] %vm157, %v119
  %162 = vst.msk [vmem:[#allocation2 + $0x20] sm:$0xff] %vm157, %v122
  %163 = vst.msk [vmem:[#allocation2 + $0x28] sm:$0xff] %vm157, %v125
  %164 = vst.msk [vmem:[#allocation2 + $0x30] sm:$0xff] %vm157, %v128
  %165 = vst.msk [vmem:[#allocation2 + $0x38] sm:$0xff] %vm157, %v131
  %166 = vst.msk [vmem:[#allocation2 + $0x40] sm:$0xff] %vm157, %v134
  %167 = vst.msk [vmem:[#allocation2 + $0x48] sm:$0xff] %vm157, %v137
  %168 = vst.msk [vmem:[#allocation2 + $0x50] sm:$0xff] %vm157, %v140
  %169 = vst.msk [vmem:[#allocation2 + $0x58] sm:$0xff] %vm157, %v143
  %170 = vst.msk [vmem:[#allocation2 + $0x60] sm:$0xff] %vm157, %v146
  %171 = vst.msk [vmem:[#allocation2 + $0x68] sm:$0xff] %vm157, %v149
  %172 = vst.msk [vmem:[#allocation2 + $0x70] sm:$0xff] %vm157, %v152
  %173 = vst.msk [vmem:[#allocation2 + $0x78] sm:$0xff] %vm157, %v155
  loop: start=0, step=1, limit=16
  $region22: #{tpu_custom_call.1} parent=0 // loop_pre_header
    _
  $region23: #{tpu_custom_call.1} parent=0 // loop_header
    %s175 = sphi 0, %s179
    %p176 = scmp.ge.s32.totalorder %s175, 16
    %v180 = vphi 0.0, %v253
  $region24: #{tpu_custom_call.1} parent=0 // loop_header_branch
    %178 = sbr.rel (%p176) target = $region28
  $region25: #{tpu_custom_call.1} parent=0 // loop_body
    %s181 = smul.u32 %s175, 8
    %s182 = scalar_lea.vmem [#allocation2], %s181
    %v183 = vld [vmem:[%s182] sm:$0xff]
    %185 = vrot.lane.b32.xlu0 %v180, 120
    %v186 = vpop.permute.xlu0 %185
    %v187 = vsel %vm43, %v186, 0
    %189 = vmatpush.msra.mxu0 0.0
    %190 = vmatpush.msra.mxu0 0.0
    %191 = vmatpush.msra.mxu0 0.0
    %192 = vmatpush.msra.mxu0 0.0
    %193 = vmatpush.msra.mxu0 0.0
    %194 = vmatpush.msra.mxu0 0.0
    %195 = vmatpush.msra.mxu0 0.0
    %196 = vmatpush.msra.mxu0 0.0
    %197 = vmatpush.msra.mxu0 0.0
    %198 = vmatpush.msra.mxu0 0.0
    %199 = vmatpush.msra.mxu0 0.0
    %200 = vmatpush.msra.mxu0 0.0
    %201 = vmatpush.msra.mxu0 0.0
    %202 = vmatpush.msra.mxu0 0.0
    %203 = vmatpush.msra.mxu0 0.0
    %204 = vmatpush.msra.mxu0 %v21
    %205 = vmatmul.f32.gmra.mxu0 %v187
    %v206 = vpop.f32.mrf.mxu0
    %v207 = vadd.f32 0.0, %v206
    %208 = vdwg.mxu0
    %v209 = vadd.f32 %v183, %v207
    %v210 = vxor.u32 %v209, 2147483648
    %v211 = vmul.f32 %v210, 1.442695
    %v212 = vpow.pop %v211
    %v213 = vadd.f32 %v212, 1.0
    %v214 = vrcp.pop %v213
    %v215 = vmul.f32 %v213, %v214
    %v216 = vsub.f32 1.0, %v215
    %v217 = vmul.f32 %v214, %v216
    %v218 = vadd.f32 %v214, %v217
    %vm219 = vweird.f32 %v213
    %vm220 = vweird.f32 %v214
    %vm221 = vmor %vm219, %vm220
    %v222 = vsel %vm221, %v214, %v218
    %v223 = vand.u32 2147483647, %v213
    %vm224 = vcmp.eq.f32.partialorder %v223, 8.507059e+37
    %v225 = vand.u32 %v213, 2147483648
    %v226 = vor.u32 1.1754944e-38, %v225
    %v227 = vsel %vm224, %v226, %v222
    %v228 = vmul.f32 1.0, %v227
    %v230 = vperm.slane %v22, 0
    %231 = vrot.lane.b32.xlu0 %v230, 16
    %v232 = vpop.permute.xlu0 %231
    %v234 = vadd.f32 %v207, %v232
    %236 = vrot.lane.b32.xlu0 %v234, 112
    %v237 = vpop.permute.xlu0 %236
    %v239 = vmul.f32 %v228, %v237
    %241 = vrot.lane.b32.xlu0 %v239, 16
    %v242 = vpop.permute.xlu0 %241
    %v244 = vadd.f32 %v183, %v242
    %v245 = vtanh.pop %v244
    %v246 = vsub.f32 1.0, %v228
    %248 = vrot.lane.b32.xlu0 %v245, 120
    %v249 = vpop.permute.xlu0 %248
    %v251 = vmul.f32 %v246, %v249
    %v252 = vmul.f32 %v228, %v180
    %v253 = vadd.f32 %v251, %v252
    %255 = vrot.lane.b32.xlu0 %v253, 120
    %v256 = vpop.permute.xlu0 %255
    %s258 = scalar_lea.vmem %s5, %s181
    %259 = vst.msk [vmem:[%s258] sm:$0xff] %vm43, %v256
  $region26: #{tpu_custom_call.1} parent=0 // loop_footer
    %s179 = sadd.s32 1, %s175
  $region27: #{tpu_custom_call.1} parent=0 // loop_footer_branch
    %174 = sbr.rel target = $region23
  $region28: #{tpu_custom_call.1} parent=0 // loop_exit
    _
  %s260 = scalar_lea.vmem %s1, 8
  %v261 = vld [vmem:[%s260] sm:$0xff]
  %s262 = scalar_lea.vmem %s2, 8
  %v263 = vld [vmem:[%s262] sm:$0xff]
  %s264 = scalar_lea.vmem %s4, 1
  %v265 = vld [vmem:[%s264] sm:$0x1]
  %v266 = vld [vmem:[%s5] sm:$0xff]
  %v267 = vld [vmem:[%s5 + $0x8] sm:$0xff]
  %v268 = vld [vmem:[%s5 + $0x10] sm:$0xff]
  %v269 = vld [vmem:[%s5 + $0x18] sm:$0xff]
  %v270 = vld [vmem:[%s5 + $0x20] sm:$0xff]
  %v271 = vld [vmem:[%s5 + $0x28] sm:$0xff]
  %v272 = vld [vmem:[%s5 + $0x30] sm:$0xff]
  %v273 = vld [vmem:[%s5 + $0x38] sm:$0xff]
  %v274 = vld [vmem:[%s5 + $0x40] sm:$0xff]
  %v275 = vld [vmem:[%s5 + $0x48] sm:$0xff]
  %v276 = vld [vmem:[%s5 + $0x50] sm:$0xff]
  %v277 = vld [vmem:[%s5 + $0x58] sm:$0xff]
  %v278 = vld [vmem:[%s5 + $0x60] sm:$0xff]
  %v279 = vld [vmem:[%s5 + $0x68] sm:$0xff]
  %v280 = vld [vmem:[%s5 + $0x70] sm:$0xff]
  %v281 = vld [vmem:[%s5 + $0x78] sm:$0xff]
  %s282 = scalar_lea.vmem %s3, 1
  %v283 = vld [vmem:[%s282] sm:$0x1]
  %v285 = vperm.slane %v283, 0
  %v288 = vsel %vm43, %v266, 0
  %v291 = vsel %vm43, %v267, 0
  %v294 = vsel %vm43, %v268, 0
  %v297 = vsel %vm43, %v269, 0
  %v300 = vsel %vm43, %v270, 0
  %v303 = vsel %vm43, %v271, 0
  %v306 = vsel %vm43, %v272, 0
  %v309 = vsel %vm43, %v273, 0
  %v312 = vsel %vm43, %v274, 0
  %v315 = vsel %vm43, %v275, 0
  %v318 = vsel %vm43, %v276, 0
  %v321 = vsel %vm43, %v277, 0
  %v324 = vsel %vm43, %v278, 0
  %v327 = vsel %vm43, %v279, 0
  %v330 = vsel %vm43, %v280, 0
  %v333 = vsel %vm43, %v281, 0
  %335 = vmatpush.msra.mxu0 0.0
  %336 = vmatpush.msra.mxu0 0.0
  %337 = vmatpush.msra.mxu0 0.0
  %338 = vmatpush.msra.mxu0 0.0
  %339 = vmatpush.msra.mxu0 0.0
  %340 = vmatpush.msra.mxu0 0.0
  %341 = vmatpush.msra.mxu0 0.0
  %342 = vmatpush.msra.mxu0 0.0
  %343 = vmatpush.msra.mxu0 0.0
  %344 = vmatpush.msra.mxu0 0.0
  %345 = vmatpush.msra.mxu0 0.0
  %346 = vmatpush.msra.mxu0 0.0
  %347 = vmatpush.msra.mxu0 0.0
  %348 = vmatpush.msra.mxu0 0.0
  %349 = vmatpush.msra.mxu0 0.0
  %350 = vmatpush.msra.mxu0 %v261
  %351 = vmatmul.f32.gmra.mxu0 %v288
  %v352 = vpop.f32.mrf.mxu0
  %v353 = vadd.f32 %v285, %v352
  %354 = vmatmul.f32.gmra.mxu0 %v291
  %v355 = vpop.f32.mrf.mxu0
  %v356 = vadd.f32 %v285, %v355
  %357 = vmatmul.f32.gmra.mxu0 %v294
  %v358 = vpop.f32.mrf.mxu0
  %v359 = vadd.f32 %v285, %v358
  %360 = vmatmul.f32.gmra.mxu0 %v297
  %v361 = vpop.f32.mrf.mxu0
  %v362 = vadd.f32 %v285, %v361
  %363 = vmatmul.f32.gmra.mxu0 %v300
  %v364 = vpop.f32.mrf.mxu0
  %v365 = vadd.f32 %v285, %v364
  %366 = vmatmul.f32.gmra.mxu0 %v303
  %v367 = vpop.f32.mrf.mxu0
  %v368 = vadd.f32 %v285, %v367
  %369 = vmatmul.f32.gmra.mxu0 %v306
  %v370 = vpop.f32.mrf.mxu0
  %v371 = vadd.f32 %v285, %v370
  %372 = vmatmul.f32.gmra.mxu0 %v309
  %v373 = vpop.f32.mrf.mxu0
  %v374 = vadd.f32 %v285, %v373
  %375 = vmatmul.f32.gmra.mxu0 %v312
  %v376 = vpop.f32.mrf.mxu0
  %v377 = vadd.f32 %v285, %v376
  %378 = vmatmul.f32.gmra.mxu0 %v315
  %v379 = vpop.f32.mrf.mxu0
  %v380 = vadd.f32 %v285, %v379
  %381 = vmatmul.f32.gmra.mxu0 %v318
  %v382 = vpop.f32.mrf.mxu0
  %v383 = vadd.f32 %v285, %v382
  %384 = vmatmul.f32.gmra.mxu0 %v321
  %v385 = vpop.f32.mrf.mxu0
  %v386 = vadd.f32 %v285, %v385
  %387 = vmatmul.f32.gmra.mxu0 %v324
  %v388 = vpop.f32.mrf.mxu0
  %v389 = vadd.f32 %v285, %v388
  %390 = vmatmul.f32.gmra.mxu0 %v327
  %v391 = vpop.f32.mrf.mxu0
  %v392 = vadd.f32 %v285, %v391
  %393 = vmatmul.f32.gmra.mxu0 %v330
  %v394 = vpop.f32.mrf.mxu0
  %v395 = vadd.f32 %v285, %v394
  %396 = vmatmul.f32.gmra.mxu0 %v333
  %v397 = vpop.f32.mrf.mxu0
  %v398 = vadd.f32 %v285, %v397
  %399 = vdwg.mxu0
  %400 = vst.msk [vmem:[#allocation2] sm:$0xff] %vm157, %v353
  %401 = vst.msk [vmem:[#allocation2 + $0x8] sm:$0xff] %vm157, %v356
  %402 = vst.msk [vmem:[#allocation2 + $0x10] sm:$0xff] %vm157, %v359
  %403 = vst.msk [vmem:[#allocation2 + $0x18] sm:$0xff] %vm157, %v362
  %404 = vst.msk [vmem:[#allocation2 + $0x20] sm:$0xff] %vm157, %v365
  %405 = vst.msk [vmem:[#allocation2 + $0x28] sm:$0xff] %vm157, %v368
  %406 = vst.msk [vmem:[#allocation2 + $0x30] sm:$0xff] %vm157, %v371
  %407 = vst.msk [vmem:[#allocation2 + $0x38] sm:$0xff] %vm157, %v374
  %408 = vst.msk [vmem:[#allocation2 + $0x40] sm:$0xff] %vm157, %v377
  %409 = vst.msk [vmem:[#allocation2 + $0x48] sm:$0xff] %vm157, %v380
  %410 = vst.msk [vmem:[#allocation2 + $0x50] sm:$0xff] %vm157, %v383
  %411 = vst.msk [vmem:[#allocation2 + $0x58] sm:$0xff] %vm157, %v386
  %412 = vst.msk [vmem:[#allocation2 + $0x60] sm:$0xff] %vm157, %v389
  %413 = vst.msk [vmem:[#allocation2 + $0x68] sm:$0xff] %vm157, %v392
  %414 = vst.msk [vmem:[#allocation2 + $0x70] sm:$0xff] %vm157, %v395
  %415 = vst.msk [vmem:[#allocation2 + $0x78] sm:$0xff] %vm157, %v398
  loop: start=0, step=1, limit=16
  $region29: #{tpu_custom_call.1} parent=0 // loop_pre_header
    _
  $region30: #{tpu_custom_call.1} parent=0 // loop_header
    %s417 = sphi 0, %s421
    %p418 = scmp.ge.s32.totalorder %s417, 16
    %v422 = vphi 0.0, %v495
  $region31: #{tpu_custom_call.1} parent=0 // loop_header_branch
    %420 = sbr.rel (%p418) target = $region35
  $region32: #{tpu_custom_call.1} parent=0 // loop_body
    %s423 = smul.u32 %s417, 8
    %s424 = scalar_lea.vmem [#allocation2], %s423
    %v425 = vld [vmem:[%s424] sm:$0xff]
    %427 = vrot.lane.b32.xlu0 %v422, 120
    %v428 = vpop.permute.xlu0 %427
    %v429 = vsel %vm43, %v428, 0
    %431 = vmatpush.msra.mxu0 0.0
    %432 = vmatpush.msra.mxu0 0.0
    %433 = vmatpush.msra.mxu0 0.0
    %434 = vmatpush.msra.mxu0 0.0
    %435 = vmatpush.msra.mxu0 0.0
    %436 = vmatpush.msra.mxu0 0.0
    %437 = vmatpush.msra.mxu0 0.0
    %438 = vmatpush.msra.mxu0 0.0
    %439 = vmatpush.msra.mxu0 0.0
    %440 = vmatpush.msra.mxu0 0.0
    %441 = vmatpush.msra.mxu0 0.0
    %442 = vmatpush.msra.mxu0 0.0
    %443 = vmatpush.msra.mxu0 0.0
    %444 = vmatpush.msra.mxu0 0.0
    %445 = vmatpush.msra.mxu0 0.0
    %446 = vmatpush.msra.mxu0 %v263
    %447 = vmatmul.f32.gmra.mxu0 %v429
    %v448 = vpop.f32.mrf.mxu0
    %v449 = vadd.f32 0.0, %v448
    %450 = vdwg.mxu0
    %v451 = vadd.f32 %v425, %v449
    %v452 = vxor.u32 %v451, 2147483648
    %v453 = vmul.f32 %v452, 1.442695
    %v454 = vpow.pop %v453
    %v455 = vadd.f32 %v454, 1.0
    %v456 = vrcp.pop %v455
    %v457 = vmul.f32 %v455, %v456
    %v458 = vsub.f32 1.0, %v457
    %v459 = vmul.f32 %v456, %v458
    %v460 = vadd.f32 %v456, %v459
    %vm461 = vweird.f32 %v455
    %vm462 = vweird.f32 %v456
    %vm463 = vmor %vm461, %vm462
    %v464 = vsel %vm463, %v456, %v460
    %v465 = vand.u32 2147483647, %v455
    %vm466 = vcmp.eq.f32.partialorder %v465, 8.507059e+37
    %v467 = vand.u32 %v455, 2147483648
    %v468 = vor.u32 1.1754944e-38, %v467
    %v469 = vsel %vm466, %v468, %v464
    %v470 = vmul.f32 1.0, %v469
    %v472 = vperm.slane %v265, 0
    %473 = vrot.lane.b32.xlu0 %v472, 16
    %v474 = vpop.permute.xlu0 %473
    %v476 = vadd.f32 %v449, %v474
    %478 = vrot.lane.b32.xlu0 %v476, 112
    %v479 = vpop.permute.xlu0 %478
    %v481 = vmul.f32 %v470, %v479
    %483 = vrot.lane.b32.xlu0 %v481, 16
    %v484 = vpop.permute.xlu0 %483
    %v486 = vadd.f32 %v425, %v484
    %v487 = vtanh.pop %v486
    %v488 = vsub.f32 1.0, %v470
    %490 = vrot.lane.b32.xlu0 %v487, 120
    %v491 = vpop.permute.xlu0 %490
    %v493 = vmul.f32 %v488, %v491
    %v494 = vmul.f32 %v470, %v422
    %v495 = vadd.f32 %v493, %v494
    %497 = vrot.lane.b32.xlu0 %v495, 120
    %v498 = vpop.permute.xlu0 %497
    %s500 = scalar_lea.vmem %s5, %s423
    %501 = vst.msk [vmem:[%s500] sm:$0xff] %vm43, %v498
  $region33: #{tpu_custom_call.1} parent=0 // loop_footer
    %s421 = sadd.s32 1, %s417
  $region34: #{tpu_custom_call.1} parent=0 // loop_footer_branch
    %416 = sbr.rel target = $region30
  $region35: #{tpu_custom_call.1} parent=0 // loop_exit
    _
  %s502 = scalar_lea.vmem %s1, 16
  %v503 = vld [vmem:[%s502] sm:$0xff]
  %s504 = scalar_lea.vmem %s2, 16
  %v505 = vld [vmem:[%s504] sm:$0xff]
  %s506 = scalar_lea.vmem %s4, 2
  %v507 = vld [vmem:[%s506] sm:$0x1]
  %v508 = vld [vmem:[%s5] sm:$0xff]
  %v509 = vld [vmem:[%s5 + $0x8] sm:$0xff]
  %v510 = vld [vmem:[%s5 + $0x10] sm:$0xff]
  %v511 = vld [vmem:[%s5 + $0x18] sm:$0xff]
  %v512 = vld [vmem:[%s5 + $0x20] sm:$0xff]
  %v513 = vld [vmem:[%s5 + $0x28] sm:$0xff]
  %v514 = vld [vmem:[%s5 + $0x30] sm:$0xff]
  %v515 = vld [vmem:[%s5 + $0x38] sm:$0xff]
  %v516 = vld [vmem:[%s5 + $0x40] sm:$0xff]
  %v517 = vld [vmem:[%s5 + $0x48] sm:$0xff]
  %v518 = vld [vmem:[%s5 + $0x50] sm:$0xff]
  %v519 = vld [vmem:[%s5 + $0x58] sm:$0xff]
  %v520 = vld [vmem:[%s5 + $0x60] sm:$0xff]
  %v521 = vld [vmem:[%s5 + $0x68] sm:$0xff]
  %v522 = vld [vmem:[%s5 + $0x70] sm:$0xff]
  %v523 = vld [vmem:[%s5 + $0x78] sm:$0xff]
  %s524 = scalar_lea.vmem %s3, 2
  %v525 = vld [vmem:[%s524] sm:$0x1]
  %v527 = vperm.slane %v525, 0
  %v530 = vsel %vm43, %v508, 0
  %v533 = vsel %vm43, %v509, 0
  %v536 = vsel %vm43, %v510, 0
  %v539 = vsel %vm43, %v511, 0
  %v542 = vsel %vm43, %v512, 0
  %v545 = vsel %vm43, %v513, 0
  %v548 = vsel %vm43, %v514, 0
  %v551 = vsel %vm43, %v515, 0
  %v554 = vsel %vm43, %v516, 0
  %v557 = vsel %vm43, %v517, 0
  %v560 = vsel %vm43, %v518, 0
  %v563 = vsel %vm43, %v519, 0
  %v566 = vsel %vm43, %v520, 0
  %v569 = vsel %vm43, %v521, 0
  %v572 = vsel %vm43, %v522, 0
  %v575 = vsel %vm43, %v523, 0
  %577 = vmatpush.msra.mxu0 0.0
  %578 = vmatpush.msra.mxu0 0.0
  %579 = vmatpush.msra.mxu0 0.0
  %580 = vmatpush.msra.mxu0 0.0
  %581 = vmatpush.msra.mxu0 0.0
  %582 = vmatpush.msra.mxu0 0.0
  %583 = vmatpush.msra.mxu0 0.0
  %584 = vmatpush.msra.mxu0 0.0
  %585 = vmatpush.msra.mxu0 0.0
  %586 = vmatpush.msra.mxu0 0.0
  %587 = vmatpush.msra.mxu0 0.0
  %588 = vmatpush.msra.mxu0 0.0
  %589 = vmatpush.msra.mxu0 0.0
  %590 = vmatpush.msra.mxu0 0.0
  %591 = vmatpush.msra.mxu0 0.0
  %592 = vmatpush.msra.mxu0 %v503
  %593 = vmatmul.f32.gmra.mxu0 %v530
  %v594 = vpop.f32.mrf.mxu0
  %v595 = vadd.f32 %v527, %v594
  %596 = vmatmul.f32.gmra.mxu0 %v533
  %v597 = vpop.f32.mrf.mxu0
  %v598 = vadd.f32 %v527, %v597
  %599 = vmatmul.f32.gmra.mxu0 %v536
  %v600 = vpop.f32.mrf.mxu0
  %v601 = vadd.f32 %v527, %v600
  %602 = vmatmul.f32.gmra.mxu0 %v539
  %v603 = vpop.f32.mrf.mxu0
  %v604 = vadd.f32 %v527, %v603
  %605 = vmatmul.f32.gmra.mxu0 %v542
  %v606 = vpop.f32.mrf.mxu0
  %v607 = vadd.f32 %v527, %v606
  %608 = vmatmul.f32.gmra.mxu0 %v545
  %v609 = vpop.f32.mrf.mxu0
  %v610 = vadd.f32 %v527, %v609
  %611 = vmatmul.f32.gmra.mxu0 %v548
  %v612 = vpop.f32.mrf.mxu0
  %v613 = vadd.f32 %v527, %v612
  %614 = vmatmul.f32.gmra.mxu0 %v551
  %v615 = vpop.f32.mrf.mxu0
  %v616 = vadd.f32 %v527, %v615
  %617 = vmatmul.f32.gmra.mxu0 %v554
  %v618 = vpop.f32.mrf.mxu0
  %v619 = vadd.f32 %v527, %v618
  %620 = vmatmul.f32.gmra.mxu0 %v557
  %v621 = vpop.f32.mrf.mxu0
  %v622 = vadd.f32 %v527, %v621
  %623 = vmatmul.f32.gmra.mxu0 %v560
  %v624 = vpop.f32.mrf.mxu0
  %v625 = vadd.f32 %v527, %v624
  %626 = vmatmul.f32.gmra.mxu0 %v563
  %v627 = vpop.f32.mrf.mxu0
  %v628 = vadd.f32 %v527, %v627
  %629 = vmatmul.f32.gmra.mxu0 %v566
  %v630 = vpop.f32.mrf.mxu0
  %v631 = vadd.f32 %v527, %v630
  %632 = vmatmul.f32.gmra.mxu0 %v569
  %v633 = vpop.f32.mrf.mxu0
  %v634 = vadd.f32 %v527, %v633
  %635 = vmatmul.f32.gmra.mxu0 %v572
  %v636 = vpop.f32.mrf.mxu0
  %v637 = vadd.f32 %v527, %v636
  %638 = vmatmul.f32.gmra.mxu0 %v575
  %v639 = vpop.f32.mrf.mxu0
  %v640 = vadd.f32 %v527, %v639
  %641 = vdwg.mxu0
  %642 = vst.msk [vmem:[#allocation2] sm:$0xff] %vm157, %v595
  %643 = vst.msk [vmem:[#allocation2 + $0x8] sm:$0xff] %vm157, %v598
  %644 = vst.msk [vmem:[#allocation2 + $0x10] sm:$0xff] %vm157, %v601
  %645 = vst.msk [vmem:[#allocation2 + $0x18] sm:$0xff] %vm157, %v604
  %646 = vst.msk [vmem:[#allocation2 + $0x20] sm:$0xff] %vm157, %v607
  %647 = vst.msk [vmem:[#allocation2 + $0x28] sm:$0xff] %vm157, %v610
  %648 = vst.msk [vmem:[#allocation2 + $0x30] sm:$0xff] %vm157, %v613
  %649 = vst.msk [vmem:[#allocation2 + $0x38] sm:$0xff] %vm157, %v616
  %650 = vst.msk [vmem:[#allocation2 + $0x40] sm:$0xff] %vm157, %v619
  %651 = vst.msk [vmem:[#allocation2 + $0x48] sm:$0xff] %vm157, %v622
  %652 = vst.msk [vmem:[#allocation2 + $0x50] sm:$0xff] %vm157, %v625
  %653 = vst.msk [vmem:[#allocation2 + $0x58] sm:$0xff] %vm157, %v628
  %654 = vst.msk [vmem:[#allocation2 + $0x60] sm:$0xff] %vm157, %v631
  %655 = vst.msk [vmem:[#allocation2 + $0x68] sm:$0xff] %vm157, %v634
  %656 = vst.msk [vmem:[#allocation2 + $0x70] sm:$0xff] %vm157, %v637
  %657 = vst.msk [vmem:[#allocation2 + $0x78] sm:$0xff] %vm157, %v640
  loop: start=0, step=1, limit=16
  $region36: #{tpu_custom_call.1} parent=0 // loop_pre_header
    _
  $region37: #{tpu_custom_call.1} parent=0 // loop_header
    %s659 = sphi 0, %s663
    %p660 = scmp.ge.s32.totalorder %s659, 16
    %v664 = vphi 0.0, %v737
  $region38: #{tpu_custom_call.1} parent=0 // loop_header_branch
    %662 = sbr.rel (%p660) target = $region42
  $region39: #{tpu_custom_call.1} parent=0 // loop_body
    %s665 = smul.u32 %s659, 8
    %s666 = scalar_lea.vmem [#allocation2], %s665
    %v667 = vld [vmem:[%s666] sm:$0xff]
    %669 = vrot.lane.b32.xlu0 %v664, 120
    %v670 = vpop.permute.xlu0 %669
    %v671 = vsel %vm43, %v670, 0
    %673 = vmatpush.msra.mxu0 0.0
    %674 = vmatpush.msra.mxu0 0.0
    %675 = vmatpush.msra.mxu0 0.0
    %676 = vmatpush.msra.mxu0 0.0
    %677 = vmatpush.msra.mxu0 0.0
    %678 = vmatpush.msra.mxu0 0.0
    %679 = vmatpush.msra.mxu0 0.0
    %680 = vmatpush.msra.mxu0 0.0
    %681 = vmatpush.msra.mxu0 0.0
    %682 = vmatpush.msra.mxu0 0.0
    %683 = vmatpush.msra.mxu0 0.0
    %684 = vmatpush.msra.mxu0 0.0
    %685 = vmatpush.msra.mxu0 0.0
    %686 = vmatpush.msra.mxu0 0.0
    %687 = vmatpush.msra.mxu0 0.0
    %688 = vmatpush.msra.mxu0 %v505
    %689 = vmatmul.f32.gmra.mxu0 %v671
    %v690 = vpop.f32.mrf.mxu0
    %v691 = vadd.f32 0.0, %v690
    %692 = vdwg.mxu0
    %v693 = vadd.f32 %v667, %v691
    %v694 = vxor.u32 %v693, 2147483648
    %v695 = vmul.f32 %v694, 1.442695
    %v696 = vpow.pop %v695
    %v697 = vadd.f32 %v696, 1.0
    %v698 = vrcp.pop %v697
    %v699 = vmul.f32 %v697, %v698
    %v700 = vsub.f32 1.0, %v699
    %v701 = vmul.f32 %v698, %v700
    %v702 = vadd.f32 %v698, %v701
    %vm703 = vweird.f32 %v697
    %vm704 = vweird.f32 %v698
    %vm705 = vmor %vm703, %vm704
    %v706 = vsel %vm705, %v698, %v702
    %v707 = vand.u32 2147483647, %v697
    %vm708 = vcmp.eq.f32.partialorder %v707, 8.507059e+37
    %v709 = vand.u32 %v697, 2147483648
    %v710 = vor.u32 1.1754944e-38, %v709
    %v711 = vsel %vm708, %v710, %v706
    %v712 = vmul.f32 1.0, %v711
    %v714 = vperm.slane %v507, 0
    %715 = vrot.lane.b32.xlu0 %v714, 16
    %v716 = vpop.permute.xlu0 %715
    %v718 = vadd.f32 %v691, %v716
    %720 = vrot.lane.b32.xlu0 %v718, 112
    %v721 = vpop.permute.xlu0 %720
    %v723 = vmul.f32 %v712, %v721
    %725 = vrot.lane.b32.xlu0 %v723, 16
    %v726 = vpop.permute.xlu0 %725
    %v728 = vadd.f32 %v667, %v726
    %v729 = vtanh.pop %v728
    %v730 = vsub.f32 1.0, %v712
    %732 = vrot.lane.b32.xlu0 %v729, 120
    %v733 = vpop.permute.xlu0 %732
    %v735 = vmul.f32 %v730, %v733
    %v736 = vmul.f32 %v712, %v664
    %v737 = vadd.f32 %v735, %v736
    %739 = vrot.lane.b32.xlu0 %v737, 120
    %v740 = vpop.permute.xlu0 %739
    %s742 = scalar_lea.vmem %s5, %s665
    %743 = vst.msk [vmem:[%s742] sm:$0xff] %vm43, %v740
  $region40: #{tpu_custom_call.1} parent=0 // loop_footer
    %s663 = sadd.s32 1, %s659
  $region41: #{tpu_custom_call.1} parent=0 // loop_footer_branch
    %658 = sbr.rel target = $region37
  $region42: #{tpu_custom_call.1} parent=0 // loop_exit
    _
  %s744 = scalar_lea.vmem %s1, 24
  %v745 = vld [vmem:[%s744] sm:$0xff]
  %s746 = scalar_lea.vmem %s2, 24
  %v747 = vld [vmem:[%s746] sm:$0xff]
  %s748 = scalar_lea.vmem %s4, 3
  %v749 = vld [vmem:[%s748] sm:$0x1]
  %v750 = vld [vmem:[%s5] sm:$0xff]
  %v751 = vld [vmem:[%s5 + $0x8] sm:$0xff]
  %v752 = vld [vmem:[%s5 + $0x10] sm:$0xff]
  %v753 = vld [vmem:[%s5 + $0x18] sm:$0xff]
  %v754 = vld [vmem:[%s5 + $0x20] sm:$0xff]
  %v755 = vld [vmem:[%s5 + $0x28] sm:$0xff]
  %v756 = vld [vmem:[%s5 + $0x30] sm:$0xff]
  %v757 = vld [vmem:[%s5 + $0x38] sm:$0xff]
  %v758 = vld [vmem:[%s5 + $0x40] sm:$0xff]
  %v759 = vld [vmem:[%s5 + $0x48] sm:$0xff]
  %v760 = vld [vmem:[%s5 + $0x50] sm:$0xff]
  %v761 = vld [vmem:[%s5 + $0x58] sm:$0xff]
  %v762 = vld [vmem:[%s5 + $0x60] sm:$0xff]
  %v763 = vld [vmem:[%s5 + $0x68] sm:$0xff]
  %v764 = vld [vmem:[%s5 + $0x70] sm:$0xff]
  %v765 = vld [vmem:[%s5 + $0x78] sm:$0xff]
  %s766 = scalar_lea.vmem %s3, 3
  %v767 = vld [vmem:[%s766] sm:$0x1]
  %v769 = vperm.slane %v767, 0
  %v772 = vsel %vm43, %v750, 0
  %v775 = vsel %vm43, %v751, 0
  %v778 = vsel %vm43, %v752, 0
  %v781 = vsel %vm43, %v753, 0
  %v784 = vsel %vm43, %v754, 0
  %v787 = vsel %vm43, %v755, 0
  %v790 = vsel %vm43, %v756, 0
  %v793 = vsel %vm43, %v757, 0
  %v796 = vsel %vm43, %v758, 0
  %v799 = vsel %vm43, %v759, 0
  %v802 = vsel %vm43, %v760, 0
  %v805 = vsel %vm43, %v761, 0
  %v808 = vsel %vm43, %v762, 0
  %v811 = vsel %vm43, %v763, 0
  %v814 = vsel %vm43, %v764, 0
  %v817 = vsel %vm43, %v765, 0
  %819 = vmatpush.msra.mxu0 0.0
  %820 = vmatpush.msra.mxu0 0.0
  %821 = vmatpush.msra.mxu0 0.0
  %822 = vmatpush.msra.mxu0 0.0
  %823 = vmatpush.msra.mxu0 0.0
  %824 = vmatpush.msra.mxu0 0.0
  %825 = vmatpush.msra.mxu0 0.0
  %826 = vmatpush.msra.mxu0 0.0
  %827 = vmatpush.msra.mxu0 0.0
  %828 = vmatpush.msra.mxu0 0.0
  %829 = vmatpush.msra.mxu0 0.0
  %830 = vmatpush.msra.mxu0 0.0
  %831 = vmatpush.msra.mxu0 0.0
  %832 = vmatpush.msra.mxu0 0.0
  %833 = vmatpush.msra.mxu0 0.0
  %834 = vmatpush.msra.mxu0 %v745
  %835 = vmatmul.f32.gmra.mxu0 %v772
  %v836 = vpop.f32.mrf.mxu0
  %v837 = vadd.f32 %v769, %v836
  %838 = vmatmul.f32.gmra.mxu0 %v775
  %v839 = vpop.f32.mrf.mxu0
  %v840 = vadd.f32 %v769, %v839
  %841 = vmatmul.f32.gmra.mxu0 %v778
  %v842 = vpop.f32.mrf.mxu0
  %v843 = vadd.f32 %v769, %v842
  %844 = vmatmul.f32.gmra.mxu0 %v781
  %v845 = vpop.f32.mrf.mxu0
  %v846 = vadd.f32 %v769, %v845
  %847 = vmatmul.f32.gmra.mxu0 %v784
  %v848 = vpop.f32.mrf.mxu0
  %v849 = vadd.f32 %v769, %v848
  %850 = vmatmul.f32.gmra.mxu0 %v787
  %v851 = vpop.f32.mrf.mxu0
  %v852 = vadd.f32 %v769, %v851
  %853 = vmatmul.f32.gmra.mxu0 %v790
  %v854 = vpop.f32.mrf.mxu0
  %v855 = vadd.f32 %v769, %v854
  %856 = vmatmul.f32.gmra.mxu0 %v793
  %v857 = vpop.f32.mrf.mxu0
  %v858 = vadd.f32 %v769, %v857
  %859 = vmatmul.f32.gmra.mxu0 %v796
  %v860 = vpop.f32.mrf.mxu0
  %v861 = vadd.f32 %v769, %v860
  %862 = vmatmul.f32.gmra.mxu0 %v799
  %v863 = vpop.f32.mrf.mxu0
  %v864 = vadd.f32 %v769, %v863
  %865 = vmatmul.f32.gmra.mxu0 %v802
  %v866 = vpop.f32.mrf.mxu0
  %v867 = vadd.f32 %v769, %v866
  %868 = vmatmul.f32.gmra.mxu0 %v805
  %v869 = vpop.f32.mrf.mxu0
  %v870 = vadd.f32 %v769, %v869
  %871 = vmatmul.f32.gmra.mxu0 %v808
  %v872 = vpop.f32.mrf.mxu0
  %v873 = vadd.f32 %v769, %v872
  %874 = vmatmul.f32.gmra.mxu0 %v811
  %v875 = vpop.f32.mrf.mxu0
  %v876 = vadd.f32 %v769, %v875
  %877 = vmatmul.f32.gmra.mxu0 %v814
  %v878 = vpop.f32.mrf.mxu0
  %v879 = vadd.f32 %v769, %v878
  %880 = vmatmul.f32.gmra.mxu0 %v817
  %v881 = vpop.f32.mrf.mxu0
  %v882 = vadd.f32 %v769, %v881
  %883 = vdwg.mxu0
  %884 = vst.msk [vmem:[#allocation2] sm:$0xff] %vm157, %v837
  %885 = vst.msk [vmem:[#allocation2 + $0x8] sm:$0xff] %vm157, %v840
  %886 = vst.msk [vmem:[#allocation2 + $0x10] sm:$0xff] %vm157, %v843
  %887 = vst.msk [vmem:[#allocation2 + $0x18] sm:$0xff] %vm157, %v846
  %888 = vst.msk [vmem:[#allocation2 + $0x20] sm:$0xff] %vm157, %v849
  %889 = vst.msk [vmem:[#allocation2 + $0x28] sm:$0xff] %vm157, %v852
  %890 = vst.msk [vmem:[#allocation2 + $0x30] sm:$0xff] %vm157, %v855
  %891 = vst.msk [vmem:[#allocation2 + $0x38] sm:$0xff] %vm157, %v858
  %892 = vst.msk [vmem:[#allocation2 + $0x40] sm:$0xff] %vm157, %v861
  %893 = vst.msk [vmem:[#allocation2 + $0x48] sm:$0xff] %vm157, %v864
  %894 = vst.msk [vmem:[#allocation2 + $0x50] sm:$0xff] %vm157, %v867
  %895 = vst.msk [vmem:[#allocation2 + $0x58] sm:$0xff] %vm157, %v870
  %896 = vst.msk [vmem:[#allocation2 + $0x60] sm:$0xff] %vm157, %v873
  %897 = vst.msk [vmem:[#allocation2 + $0x68] sm:$0xff] %vm157, %v876
  %898 = vst.msk [vmem:[#allocation2 + $0x70] sm:$0xff] %vm157, %v879
  %899 = vst.msk [vmem:[#allocation2 + $0x78] sm:$0xff] %vm157, %v882
  loop: start=0, step=1, limit=16
  $region43: #{tpu_custom_call.1} parent=0 // loop_pre_header
    _
  $region44: #{tpu_custom_call.1} parent=0 // loop_header
    %s901 = sphi 0, %s905
    %p902 = scmp.ge.s32.totalorder %s901, 16
    %v906 = vphi 0.0, %v979
  $region45: #{tpu_custom_call.1} parent=0 // loop_header_branch
    %904 = sbr.rel (%p902) target = $region49
  $region46: #{tpu_custom_call.1} parent=0 // loop_body
    %s907 = smul.u32 %s901, 8
    %s908 = scalar_lea.vmem [#allocation2], %s907
    %v909 = vld [vmem:[%s908] sm:$0xff]
    %911 = vrot.lane.b32.xlu0 %v906, 120
    %v912 = vpop.permute.xlu0 %911
    %v913 = vsel %vm43, %v912, 0
    %915 = vmatpush.msra.mxu0 0.0
    %916 = vmatpush.msra.mxu0 0.0
    %917 = vmatpush.msra.mxu0 0.0
    %918 = vmatpush.msra.mxu0 0.0
    %919 = vmatpush.msra.mxu0 0.0
    %920 = vmatpush.msra.mxu0 0.0
    %921 = vmatpush.msra.mxu0 0.0
    %922 = vmatpush.msra.mxu0 0.0
    %923 = vmatpush.msra.mxu0 0.0
    %924 = vmatpush.msra.mxu0 0.0
    %925 = vmatpush.msra.mxu0 0.0
    %926 = vmatpush.msra.mxu0 0.0
    %927 = vmatpush.msra.mxu0 0.0
    %928 = vmatpush.msra.mxu0 0.0
    %929 = vmatpush.msra.mxu0 0.0
    %930 = vmatpush.msra.mxu0 %v747
    %931 = vmatmul.f32.gmra.mxu0 %v913
    %v932 = vpop.f32.mrf.mxu0
    %v933 = vadd.f32 0.0, %v932
    %934 = vdwg.mxu0
    %v935 = vadd.f32 %v909, %v933
    %v936 = vxor.u32 %v935, 2147483648
    %v937 = vmul.f32 %v936, 1.442695
    %v938 = vpow.pop %v937
    %v939 = vadd.f32 %v938, 1.0
    %v940 = vrcp.pop %v939
    %v941 = vmul.f32 %v939, %v940
    %v942 = vsub.f32 1.0, %v941
    %v943 = vmul.f32 %v940, %v942
    %v944 = vadd.f32 %v940, %v943
    %vm945 = vweird.f32 %v939
    %vm946 = vweird.f32 %v940
    %vm947 = vmor %vm945, %vm946
    %v948 = vsel %vm947, %v940, %v944
    %v949 = vand.u32 2147483647, %v939
    %vm950 = vcmp.eq.f32.partialorder %v949, 8.507059e+37
    %v951 = vand.u32 %v939, 2147483648
    %v952 = vor.u32 1.1754944e-38, %v951
    %v953 = vsel %vm950, %v952, %v948
    %v954 = vmul.f32 1.0, %v953
    %v956 = vperm.slane %v749, 0
    %957 = vrot.lane.b32.xlu0 %v956, 16
    %v958 = vpop.permute.xlu0 %957
    %v960 = vadd.f32 %v933, %v958
    %962 = vrot.lane.b32.xlu0 %v960, 112
    %v963 = vpop.permute.xlu0 %962
    %v965 = vmul.f32 %v954, %v963
    %967 = vrot.lane.b32.xlu0 %v965, 16
    %v968 = vpop.permute.xlu0 %967
    %v970 = vadd.f32 %v909, %v968
    %v971 = vtanh.pop %v970
    %v972 = vsub.f32 1.0, %v954
    %974 = vrot.lane.b32.xlu0 %v971, 120
    %v975 = vpop.permute.xlu0 %974
    %v977 = vmul.f32 %v972, %v975
    %v978 = vmul.f32 %v954, %v906
    %v979 = vadd.f32 %v977, %v978
    %981 = vrot.lane.b32.xlu0 %v979, 120
    %v982 = vpop.permute.xlu0 %981
    %s984 = scalar_lea.vmem %s5, %s907
    %985 = vst.msk [vmem:[%s984] sm:$0xff] %vm43, %v982
  $region47: #{tpu_custom_call.1} parent=0 // loop_footer
    %s905 = sadd.s32 1, %s901
  $region48: #{tpu_custom_call.1} parent=0 // loop_footer_branch
    %900 = sbr.rel target = $region44
  $region49: #{tpu_custom_call.1} parent=0 // loop_exit
    _
  // Predicated region
  $region50: #{tpu_custom_call.1} parent=0 // pred_check
    _
  $region51: #{tpu_custom_call.1} parent=0 // pred_check_branch
    %987 = sbr.rel (0) target = $region53
  $region52: #{tpu_custom_call.1} parent=0 // pred_region
    _
  $region53: #{tpu_custom_call.1} parent=0 // pred_fallthru
    _
  // Predicated region
  $region54: #{tpu_custom_call.1} parent=0 // pred_check
    _
  $region55: #{tpu_custom_call.1} parent=0 // pred_check_branch
    %989 = sbr.rel (0) target = $region57
  $region56: #{tpu_custom_call.1} parent=0 // pred_region
    _
  $region57: #{tpu_custom_call.1} parent=0 // pred_fallthru
    _

</llo_original>
